<compile_context>
chip_gen: v5e
topology: v5e:2x2
jax: 0.10.0
libtpu: 0.0.40
codegen_flags: <defaults>
</compile_context>

<pallas_src>
import jax
import jax.numpy as jnp
from jax import lax
from jax.experimental import pallas as pl
from jax.experimental.pallas import tpu as pltpu


_VMEM_BUDGET = 24 * 1024 * 1024   # per-step working-set cap (safe on v5e/v6e/v7x)
_VMEM_LIMIT = 48 * 1024 * 1024    # scoped VMEM limit handed to Mosaic


def _round_up(x, m):
    return (x + m - 1) // m * m


# --------------------------------------------------------------------------- #
# Kernel: one MXU matmul + bias add per (tile_m, tile_n) output block.
# --------------------------------------------------------------------------- #
def _conv_bn_kernel(p_ref, w_ref, b_ref, o_ref):
    # p_ref: (TM, K)   im2col patches (bf16 or f32)
    # w_ref: (K, TN)   BN-folded conv weight block
    # b_ref: (1, TN)   BN-folded conv bias (f32)
    # o_ref: (TM, TN)  output block (bf16 or f32)
    y = jnp.dot(p_ref[...], w_ref[...], preferred_element_type=jnp.float32)
    o_ref[...] = (y + b_ref[...]).astype(o_ref.dtype)


# --------------------------------------------------------------------------- #
# Tiling heuristics.
# --------------------------------------------------------------------------- #
def _choose_tile_n(c_out_p):
    """Cout tile: full Cout if small, else largest multiple-of-128 divisor <= 512."""
    if c_out_p <= 512:
        return c_out_p
    for cand in range(512, 127, -128):
        if c_out_p % cand == 0:
            return cand
    return 128


def _choose_tile_m(m, k_pad, tile_n, itemsize, tile_m_max=8192):
    """Largest row tile that (double-buffered) fits the VMEM budget."""
    per_row = 2 * (k_pad + tile_n) * itemsize                       # patch + out rows
    fixed = 2 * (k_pad * tile_n) * itemsize + 2 * tile_n * 4        # weight + bias blocks
    cap = max(8, (_VMEM_BUDGET - fixed) // per_row)
    cap = (cap // 8) * 8
    tile_m = min(tile_m_max, cap)

    m8 = _round_up(m, 8)
    if m8 <= tile_m:
        # Whole problem fits one block: split into 2 parallel blocks when possible
        # so both v7x TensorCores are used (harmless on single-TC v5e/v6e).
        if m8 >= 16 and m8 % 16 == 0:
            return m8 // 2
        return m8

    # Prefer the largest multiple-of-8 divisor of M (no M padding, no out[:M] slice).
    if m % 8 == 0:
        cand = tile_m - (tile_m % 8)
        while cand >= 8:
            if m % cand == 0:
                return cand
            cand -= 8
    return tile_m


# --------------------------------------------------------------------------- #
# Pallas wrapper.
# --------------------------------------------------------------------------- #
def conv_bn_pallas(patches, w_folded, b_folded, *, out_dtype=jnp.bfloat16,
                   compute_dtype=jnp.bfloat16, tile_m_max=8192):
    """patches: (M, K); w_folded: (K, Cout); b_folded: (Cout,) -> (M, Cout) out_dtype."""
    m, k = patches.shape
    c_out = w_folded.shape[1]

    # Lane-dense output: pad Cout to a multiple of 128 (avoids masked vst stores).
    c_out_p = _round_up(c_out, 128)
    # Contraction dim padded to a sublane multiple (27 -> 32 for Cin=3).
    k_pad = _round_up(k, 8)

    if c_out_p != c_out or k_pad != k:
        w_folded = jnp.pad(w_folded, ((0, k_pad - k), (0, c_out_p - c_out)))
        b_folded = jnp.pad(b_folded, ((0, c_out_p - c_out),))

    tile_n = _choose_tile_n(c_out_p)
    itemsize = jnp.dtype(compute_dtype).itemsize
    tile_m = _choose_tile_m(m, k_pad, tile_n, itemsize, tile_m_max)
    m_pad = _round_up(m, tile_m)

    # Single pad covering both the K pad and the (usually zero) M pad; the cast
    # to the compute dtype is a no-op if the patches were already produced there.
    patches = patches.astype(compute_dtype)
    if m_pad != m or k_pad != k:
        patches = jnp.pad(patches, ((0, m_pad - m), (0, k_pad - k)))
    w_folded = w_folded.astype(compute_dtype)
    b_folded = b_folded.reshape(1, c_out_p).astype(jnp.float32)

    grid = (m_pad // tile_m, c_out_p // tile_n)
    out = pl.pallas_call(
        _conv_bn_kernel,
        out_shape=jax.ShapeDtypeStruct((m_pad, c_out_p), out_dtype),
        grid_spec=pl.GridSpec(
            grid=grid,
            in_specs=[
                pl.BlockSpec((tile_m, k_pad), lambda i, j: (i, 0)),
                pl.BlockSpec((k_pad, tile_n), lambda i, j: (0, j)),
                pl.BlockSpec((1, tile_n), lambda i, j: (0, j)),
            ],
            out_specs=pl.BlockSpec((tile_m, tile_n), lambda i, j: (i, j)),
        ),
        compiler_params=pltpu.CompilerParams(
            dimension_semantics=("parallel", "parallel"),
            vmem_limit_bytes=_VMEM_LIMIT,
        ),
    )(patches, w_folded, b_folded)

    if m_pad != m or c_out_p != c_out:
        out = out[:m, :c_out]
    return out


# --------------------------------------------------------------------------- #
# BN folding / patch extraction / module forward.
# --------------------------------------------------------------------------- #
def fold_bn(w_hwio, conv_b, gamma, beta, mean, var, eps=1e-5):
    """Fold inference-mode BN into the conv.  w_hwio: (KH, KW, Cin, Cout)."""
    scale = gamma / jnp.sqrt(var + eps)                           # (Cout,)
    w_f = w_hwio * scale[None, None, None, :]
    b_f = (conv_b - mean) * scale + beta
    kh, kw, c_in, c_out = w_hwio.shape
    return w_f.reshape(kh * kw * c_in, c_out), b_f


def extract_patches_3x3_s2(x_nchw, compute_dtype=jnp.bfloat16):
    """im2col for a 3x3 / stride-2 / pad-1 conv.  Returns (M, 9*Cin), NHWC token order."""
    b, c, h, w = x_nchw.shape
    h_out = (h + 2 - 3) // 2 + 1
    w_out = (w + 2 - 3) // 2 + 1
    x = jnp.transpose(x_nchw, (0, 2, 3, 1)).astype(compute_dtype)  # NHWC, compute dtype
    x = jnp.pad(x, ((0, 0), (1, 1), (1, 1), (0, 0)))
    cols = []
    for dy in range(3):
        for dx in range(3):
            cols.append(lax.slice(
                x, (0, dy, dx, 0),
                (b, dy + 2 * h_out - 1, dx + 2 * w_out - 1, c),
                (1, 2, 2, 1)))
    p = jnp.stack(cols, axis=3)                                    # (B, Ho, Wo, 9, Cin)
    return p.reshape(b * h_out * w_out, 9 * c), (b, h_out, w_out)


def downsample_forward(x_nchw, params, *, eps=1e-5, out_dtype=jnp.bfloat16,
                       compute_dtype=jnp.bfloat16, out_layout="NCHW"):
    """Downsample forward: Conv3x3(stride=2, pad=1) + BN (inference)."""
    patches, (b, h_out, w_out) = extract_patches_3x3_s2(x_nchw, compute_dtype)
    w_f, b_f = fold_bn(params["w"], params["b"], params["gamma"], params["beta"],
                       params["mean"], params["var"], eps=eps)
    y_tok = conv_bn_pallas(patches, w_f, b_f, out_dtype=out_dtype,
                           compute_dtype=compute_dtype)
    c_out = w_f.shape[1]
    y_nhwc = y_tok.reshape(b, h_out, w_out, c_out)
    if out_layout == "NHWC":
        # Perf-preferred: skip the extra HBM round trip of the transpose and let
        # the consumer read NHWC (token-major, Cout lane-dense).
        return y_nhwc
    return jnp.transpose(y_nhwc, (0, 3, 1, 2))                     # module semantics: NCHW


def downsample_reference(x_nchw, params, eps=1e-5):
    """Pure-JAX/XLA reference: lax conv + explicit inference-mode BN."""
    w_oihw = jnp.transpose(params["w"], (3, 2, 0, 1))              # (Cout, Cin, KH, KW)
    y = lax.conv_general_dilated(
        x_nchw, w_oihw, window_strides=(2, 2), padding=((1, 1), (1, 1)),
        dimension_numbers=("NCHW", "OIHW", "NCHW"),
        precision=lax.Precision.HIGHEST)
    y = y + params["b"][None, :, None, None]
    scale = (params["gamma"] / jnp.sqrt(params["var"] + eps))[None, :, None, None]
    return (y - params["mean"][None, :, None, None]) * scale + params["beta"][None, :, None, None]


def init_params(key, c_in, c_out):
    ks = jax.random.split(key, 6)
    fan_in = 9 * c_in
    w = jax.random.normal(ks[0], (3, 3, c_in, c_out), jnp.float32) / jnp.sqrt(fan_in)
    b = 0.02 * jax.random.normal(ks[1], (c_out,), jnp.float32)
    gamma = 1.0 + 0.1 * jax.random.normal(ks[2], (c_out,), jnp.float32)
    beta = 0.1 * jax.random.normal(ks[3], (c_out,), jnp.float32)
    mean = 0.1 * jax.random.normal(ks[4], (c_out,), jnp.float32)
    var = jnp.abs(1.0 + 0.1 * jax.random.normal(ks[5], (c_out,), jnp.float32))
    return dict(w=w, b=b, gamma=gamma, beta=beta, mean=mean, var=var)


# TODO(synk): training-mode SyncBN (cross-device batch-statistics reduction) has no
# clean single-kernel equivalent here; BN is evaluated in inference mode (running
# stats) and folded into the conv, matching module.eval() forward semantics.


if __name__ == "__main__":
    B, C_IN, H, W = 2, 3, 16, 16        # module default in_dim=3
    C_OUT = 256                         # lane-dense (multiple of 128)

    key = jax.random.PRNGKey(0)
    kx, kp = jax.random.split(key)
    x = jax.random.normal(kx, (B, C_IN, H, W), jnp.float32)
    params = init_params(kp, C_IN, C_OUT)

    ref = jax.block_until_ready(downsample_reference(x, params))

    # Tight correctness check on the f32 path.
    out_f32 = jax.block_until_ready(
        downsample_forward(x, params, out_dtype=jnp.float32, compute_dtype=jnp.float32))
    assert out_f32.shape == (B, C_OUT, H // 2, W // 2), out_f32.shape
    assert jnp.allclose(out_f32, ref, atol=5e-3, rtol=5e-3), \
        float(jnp.max(jnp.abs(out_f32 - ref)))

    # Fast bf16 path (default): looser tolerance for the bf16 operand/output cast.
    out_bf16 = jax.block_until_ready(downsample_forward(x, params))
    assert out_bf16.shape == (B, C_OUT, H // 2, W // 2), out_bf16.shape
    assert out_bf16.dtype == jnp.bfloat16
    assert jnp.allclose(out_bf16.astype(jnp.float32), ref, atol=8e-2, rtol=5e-2), \
        float(jnp.max(jnp.abs(out_bf16.astype(jnp.float32) - ref)))

    print("KERNEL_OK")
</pallas_src>

<mosaic_0001>
module attributes {stable_mosaic.version = 11 : i64} {
  func.func @_conv_bn_kernel(%arg0: i32, %arg1: i32, %arg2: memref<64x32xf32, #tpu.memory_space<vmem>>, %arg3: memref<32x256xf32, #tpu.memory_space<vmem>>, %arg4: memref<1x256xf32, #tpu.memory_space<vmem>>, %arg5: memref<64x256xf32, #tpu.memory_space<vmem>>) attributes {dimension_semantics = [#tpu.dimension_semantics<parallel>, #tpu.dimension_semantics<parallel>], iteration_bounds = array<i64: 2, 1>, scalar_prefetch = 0 : i64, scratch_operands = 0 : i64, tpu.core_type = #tpu.core_type<tc>, window_params = [{transform_indices = @transform_0, window_bounds = array<i64: 64, 32>}, {transform_indices = @transform_1, window_bounds = array<i64: 32, 256>}, {transform_indices = @transform_2, window_bounds = array<i64: 1, 256>}, {transform_indices = @transform_3, window_bounds = array<i64: 64, 256>}]} {
    %c0 = arith.constant 0 : index
    %c0_0 = arith.constant 0 : index
    %0 = vector.load %arg2[%c0, %c0_0] : memref<64x32xf32, #tpu.memory_space<vmem>>, vector<64x32xf32>
    %c0_1 = arith.constant 0 : index
    %c0_2 = arith.constant 0 : index
    %1 = vector.load %arg3[%c0_1, %c0_2] : memref<32x256xf32, #tpu.memory_space<vmem>>, vector<32x256xf32>
    %cst = arith.constant dense<0.000000e+00> : vector<64x256xf32>
    %2 = tpu.matmul %0, %1, %cst {dimension_numbers = #tpu.dot_dimension_numbers<[1], [0], [0], [1], [0, 0, 1, 1], [], []>} : vector<64x32xf32>, vector<32x256xf32>, vector<64x256xf32> -> vector<64x256xf32>
    %c0_3 = arith.constant 0 : index
    %c0_4 = arith.constant 0 : index
    %3 = vector.load %arg4[%c0_3, %c0_4] : memref<1x256xf32, #tpu.memory_space<vmem>>, vector<1x256xf32>
    %4 = vector.broadcast %3 : vector<1x256xf32> to vector<64x256xf32>
    %5 = arith.addf %2, %4 : vector<64x256xf32>
    %c0_5 = arith.constant 0 : index
    %c0_6 = arith.constant 0 : index
    %6 = vector.load %arg5[%c0_5, %c0_6] : memref<64x256xf32, #tpu.memory_space<vmem>>, vector<64x256xf32>
    tpu.vector_store %arg5[%c0_5, %c0_6], %5 {strides = array<i32>} : memref<64x256xf32, #tpu.memory_space<vmem>>, vector<64x256xf32>,
    return
  }
  func.func @transform_0(%arg0: i32, %arg1: i32) -> (i32, i32) {
    %c0_i32 = arith.constant 0 : i32
    %c0_i32_0 = arith.constant 0 : i32
    return %arg0, %c0_i32 : i32, i32
  }
  func.func @transform_1(%arg0: i32, %arg1: i32) -> (i32, i32) {
    %c0_i32 = arith.constant 0 : i32
    %c0_i32_0 = arith.constant 0 : i32
    return %c0_i32, %arg1 : i32, i32
  }
  func.func @transform_2(%arg0: i32, %arg1: i32) -> (i32, i32) {
    %c0_i32 = arith.constant 0 : i32
    %c0_i32_0 = arith.constant 0 : i32
    return %c0_i32, %arg1 : i32, i32
  }
  func.func @transform_3(%arg0: i32, %arg1: i32) -> (i32, i32) {
    %c0_i32 = arith.constant 0 : i32
    return %arg0, %arg1 : i32, i32
  }
}

</mosaic_0001>

<llo_original>
// kernel: tpu_custom_call.1
$region0: #{tpu_custom_call.1}
  #allocation0 [shape = 'u32[]', space=smem, size = 0x4, offset = 0x4, fixed_abs, tag = 'smem constant byte address 0x4 - core index']
  #allocation1 [shape = 'u32[72,128]{1,0:T(1,128)}', space=vmem, size = 0x9000, scoped, tag = 'internal scratch']
  %s0 = inlined_call_operand.vmem [shape: f32[128,32], index: 0, kind: input, shape index: {}]
  %s1 = inlined_call_operand.vmem [shape: f32[32,256], index: 1, kind: input, shape index: {}]
  %s2 = inlined_call_operand.vmem [shape: f32[1,256], index: 2, kind: input, shape index: {}]
  %s3 = inlined_call_operand.hbm [shape: f32[128,256], index: 3, kind: output, shape index: {}]
  %s4 = sld [smem:[#allocation0]]
  $region45: #{tpu_custom_call.1} parent=0
    _
  %s6 = ssub.s32 1, %s4
  %s7 = scalar_select 0, %s6, %s4
  $region1: #{tpu_custom_call.1} parent=0
    #allocation2 [shape = 'u8[131072]{0}', space=vmem, size = 0x20000, scoped, tag = 'output window, operand 0']
    #allocation3 [shape = 's32[2]{0}', space=sflag, size = 0x8, scoped, tag = 'scoped memory for tpu_custom_call.1']
    %8 = vsyncpa [#allocation3], 0
    %s9 = scalar_lea.sflag [#allocation3], 1
    %10 = vsyncpa %s9, 0
    loop: start=0, step=1, limit=4
    $region2: #{tpu_custom_call.1} parent=1 // loop_pre_header
      _
    $region3: #{tpu_custom_call.1} parent=1 // loop_header
      %s12 = sphi 0, %s16
      %p13 = scmp.ge.s32.totalorder %s12, 4
      %s19 = sphi 0, %s31
      %s20 = sphi 0, %s27
      %s21 = sphi 0, %s19
      %s22 = sphi 0, %s20
      %s23 = sphi 0, %s21
      %s24 = sphi 0, %s22
      %s34 = sphi 0, %s36
      %s37 = sphi 0, %s34
      %s38 = sphi 0, %s37
      %s54 = sphi 0, %s38
      %s60 = sphi 0, %s62
      %s63 = sphi 0, %s60
      %s64 = sphi 0, %s63
      %s80 = sphi 0, %s64
      %s86 = sphi 0, %s88
      %s89 = sphi 0, %s86
      %s90 = sphi 0, %s89
      %s106 = sphi 0, %s90
      %s114 = sphi 0, %s116
      %s117 = sphi 0, %s114
      %s118 = sphi 0, %s117
      %s134 = sphi 0, %s118
    $region4: #{tpu_custom_call.1} parent=1 // loop_header_branch
      %15 = sbr.rel (%p13) target = $region8
    $region5: #{tpu_custom_call.1} parent=1 // loop_body
      %s17 = ssub.s32 %s12, 1
      %s18 = ssub.s32 %s12, 2
      %s25 = sadd.s32 1, %s20
      %p26 = scmp.ge.s32.totalorder %s25, 1
      %s27 = scalar_select %p26, 0, %s25
      %s28 = sadd.s32 1, %s19
      %s29 = scalar_select %p26, %s28, %s19
      %p30 = scmp.ge.s32.totalorder %s29, 2
      %s31 = scalar_select %p30, 0, %s29
      %s32 = ssub.s32 %s19, %s31
      %p33 = scmp.eq.s32.totalorder %s32, 0
      %s35 = sadd.s32 %s34, 1
      %s36 = scalar_select %p33, %s34, %s35
      %p39 = pneg %p33
      %p40 = scmp.eq.s32.totalorder %s12, 1
      %p41 = por %p39, %p40
      %p42 = scmp.ne.s32.totalorder %s34, %s37
      %p43 = scmp.eq.s32.totalorder %s12, 0
      %p44 = por %p42, %p43
      %p45 = scmp.ne.s32.totalorder %s34, %s37
      %p46 = scmp.eq.s32.totalorder %s17, 1
      %p47 = por %p45, %p46
      %p48 = scmp.ne.s32.totalorder %s37, %s38
      %p49 = scmp.eq.s32.totalorder %s17, 0
      %p50 = por %p48, %p49
      %p51 = scmp.ne.s32.totalorder %s37, %s38
      %p52 = scmp.eq.s32.totalorder %s18, 1
      %p53 = por %p51, %p52
      %p55 = scmp.ne.s32.totalorder %s38, %s54
      %p56 = scmp.eq.s32.totalorder %s18, 0
      %p57 = por %p55, %p56
      %s58 = ssub.s32 %s20, %s27
      %p59 = scmp.eq.s32.totalorder %s58, 0
      %s61 = sadd.s32 %s60, 1
      %s62 = scalar_select %p59, %s60, %s61
      %p65 = pneg %p59
      %p66 = scmp.eq.s32.totalorder %s12, 1
      %p67 = por %p65, %p66
      %p68 = scmp.ne.s32.totalorder %s60, %s63
      %p69 = scmp.eq.s32.totalorder %s12, 0
      %p70 = por %p68, %p69
      %p71 = scmp.ne.s32.totalorder %s60, %s63
      %p72 = scmp.eq.s32.totalorder %s17, 1
      %p73 = por %p71, %p72
      %p74 = scmp.ne.s32.totalorder %s63, %s64
      %p75 = scmp.eq.s32.totalorder %s17, 0
      %p76 = por %p74, %p75
      %p77 = scmp.ne.s32.totalorder %s63, %s64
      %p78 = scmp.eq.s32.totalorder %s18, 1
      %p79 = por %p77, %p78
      %p81 = scmp.ne.s32.totalorder %s64, %s80
      %p82 = scmp.eq.s32.totalorder %s18, 0
      %p83 = por %p81, %p82
      %s84 = ssub.s32 %s20, %s27
      %p85 = scmp.eq.s32.totalorder %s84, 0
      %s87 = sadd.s32 %s86, 1
      %s88 = scalar_select %p85, %s86, %s87
      %p91 = pneg %p85
      %p92 = scmp.eq.s32.totalorder %s12, 1
      %p93 = por %p91, %p92
      %p94 = scmp.ne.s32.totalorder %s86, %s89
      %p95 = scmp.eq.s32.totalorder %s12, 0
      %p96 = por %p94, %p95
      %p97 = scmp.ne.s32.totalorder %s86, %s89
      %p98 = scmp.eq.s32.totalorder %s17, 1
      %p99 = por %p97, %p98
      %p100 = scmp.ne.s32.totalorder %s89, %s90
      %p101 = scmp.eq.s32.totalorder %s17, 0
      %p102 = por %p100, %p101
      %p103 = scmp.ne.s32.totalorder %s89, %s90
      %p104 = scmp.eq.s32.totalorder %s18, 1
      %p105 = por %p103, %p104
      %p107 = scmp.ne.s32.totalorder %s90, %s106
      %p108 = scmp.eq.s32.totalorder %s18, 0
      %p109 = por %p107, %p108
      %s110 = ssub.s32 %s19, %s31
      %s111 = ssub.s32 %s20, %s27
      %s112 = sor.u32 %s110, %s111
      %p113 = scmp.eq.s32.totalorder %s112, 0
      %s115 = sadd.s32 %s114, 1
      %s116 = scalar_select %p113, %s114, %s115
      %p119 = pneg %p113
      %p120 = scmp.eq.s32.totalorder %s12, 1
      %p121 = por %p119, %p120
      %p122 = scmp.ne.s32.totalorder %s114, %s117
      %p123 = scmp.eq.s32.totalorder %s12, 0
      %p124 = por %p122, %p123
      %p125 = scmp.ne.s32.totalorder %s114, %s117
      %p126 = scmp.eq.s32.totalorder %s17, 1
      %p127 = por %p125, %p126
      %p128 = scmp.ne.s32.totalorder %s117, %s118
      %p129 = scmp.eq.s32.totalorder %s17, 0
      %p130 = por %p128, %p129
      %p131 = scmp.ne.s32.totalorder %s117, %s118
      %p132 = scmp.eq.s32.totalorder %s18, 1
      %p133 = por %p131, %p132
      %p135 = scmp.ne.s32.totalorder %s118, %s134
      %p136 = scmp.eq.s32.totalorder %s18, 0
      %p137 = por %p135, %p136
      %p138 = scmp.le.s32.totalorder 1, %s12
      %p139 = scmp.lt.s32.totalorder %s12, 3
      %p140 = pnand %p138, %p139
      %p141 = pneg %p140
      // Predicated region
      $region9: #{tpu_custom_call.1} parent=5 // pred_check
        _
      $region10: #{tpu_custom_call.1} parent=5 // pred_check_branch
        %143 = sbr.rel (%p140) target = $region12
      $region11: #{tpu_custom_call.1} parent=5 // pred_region
        %s144 = ssub.s32 %s12, 1
        // Predicated region
        $region13: #{tpu_custom_call.1} parent=11 // pred_check
          %p145 = pneg %p76
        $region14: #{tpu_custom_call.1} parent=11 // pred_check_branch
          %147 = sbr.rel (%p145) target = $region16
        $region15: #{tpu_custom_call.1} parent=11 // pred_region
          %s148 = smul.u32 2, %s22
          %p149 = scmp.lt.s32.totalorder %s148, 1
          %s150 = scalar_select %p149, %s148, 1
          %s151 = smul.addr %s150, 8
          %s152 = scalar_lea.vmem %s1, %s151
          %s153 = smul.u32 2, %s22
        $region16: #{tpu_custom_call.1} parent=11 // pred_fallthru
          _
        // Predicated region
        $region17: #{tpu_custom_call.1} parent=11 // pred_check
          %p154 = pneg %p102
        $region18: #{tpu_custom_call.1} parent=11 // pred_check_branch
          %156 = sbr.rel (%p154) target = $region20
        $region19: #{tpu_custom_call.1} parent=11 // pred_region
          %s157 = smul.u32 2, %s22
          %p158 = scmp.lt.s32.totalorder %s157, 1
          %s159 = scalar_select %p158, %s157, 1
          %s160 = scalar_lea.vmem %s2, %s159
          %s161 = smul.u32 2, %s22
        $region20: #{tpu_custom_call.1} parent=11 // pred_fallthru
          _
      $region12: #{tpu_custom_call.1} parent=5 // pred_fallthru
        _
      %p162 = scmp.lt.s32.totalorder %s12, 2
      // Predicated region
      $region21: #{tpu_custom_call.1} parent=5 // pred_check
        %p163 = pneg %p162
      $region22: #{tpu_custom_call.1} parent=5 // pred_check_branch
        %165 = sbr.rel (%p163) target = $region24
      $region23: #{tpu_custom_call.1} parent=5 // pred_region
        // Predicated region
        $region25: #{tpu_custom_call.1} parent=23 // pred_check
          %p166 = pneg %p44
        $region26: #{tpu_custom_call.1} parent=23 // pred_check_branch
          %168 = sbr.rel (%p166) target = $region28
        $region27: #{tpu_custom_call.1} parent=23 // pred_region
          %s169 = smul.u32 8, %s19
          %p170 = scmp.lt.s32.totalorder %s169, 15
          %s171 = scalar_select %p170, %s169, 15
          %s172 = smul.addr %s171, 8
          %s173 = scalar_lea.vmem %s0, %s172
          %s174 = smul.u32 8, %s19
        $region28: #{tpu_custom_call.1} parent=23 // pred_fallthru
          _
      $region24: #{tpu_custom_call.1} parent=5 // pred_fallthru
        _
      %p175 = scmp.le.s32.totalorder 1, %s12
      %p176 = scmp.lt.s32.totalorder %s12, 3
      %p177 = pnand %p175, %p176
      %p178 = pneg %p177
      // Predicated region
      $region29: #{tpu_custom_call.1} parent=5 // pred_check
        _
      $region30: #{tpu_custom_call.1} parent=5 // pred_check_branch
        %180 = sbr.rel (%p177) target = $region32
      $region31: #{tpu_custom_call.1} parent=5 // pred_region
        %s181 = ssub.s32 %s12, 1
        %s182 = smul.u32 8, %s21
        %p183 = scmp.lt.s32.totalorder %s182, 15
        %s184 = scalar_select %p183, %s182, 15
        %s185 = smul.addr %s184, 8
        %s186 = scalar_lea.vmem %s0, %s185
        %p187 = pneg %p50
        %p188 = pneg %p47
        %s189 = smul.u32 2, %s22
        %p190 = scmp.lt.s32.totalorder %s189, 1
        %s191 = scalar_select %p190, %s189, 1
        %s192 = smul.addr %s191, 8
        %s193 = scalar_lea.vmem %s1, %s192
        %p194 = pneg %p76
        %p195 = pneg %p73
        %s196 = smul.u32 2, %s22
        %p197 = scmp.lt.s32.totalorder %s196, 1
        %s198 = scalar_select %p197, %s196, 1
        %s199 = scalar_lea.vmem %s2, %s198
        %p200 = pneg %p102
        %p201 = pneg %p99
        %p202 = pneg %p130
        %p203 = pneg %p127
        %s204 = sand.u32 %s117, 1
        %s205 = scalar_lea.sflag [#allocation3], %s204
        %s206 = sand.u32 %s117, 1
        %s207 = smul.addr %s206, 128
        %s208 = scalar_lea.vmem [#allocation2], %s207
        %s209 = smul.u32 8, %s21
        %p210 = scmp.lt.s32.totalorder %s209, 15
        %s211 = scalar_select %p210, %s209, 15
        %s212 = smul.addr %s211, 8
        %s213 = scalar_lea.vmem %s0, %s212
        %s214 = smul.u32 8, %s21
        %s215 = smul.u32 2, %s22
        %p216 = scmp.lt.s32.totalorder %s215, 1
        %s217 = scalar_select %p216, %s215, 1
        %s218 = smul.addr %s217, 8
        %s219 = scalar_lea.vmem %s1, %s218
        %s220 = smul.u32 2, %s22
        %s221 = smul.u32 2, %s22
        %p222 = scmp.lt.s32.totalorder %s221, 1
        %s223 = scalar_select %p222, %s221, 1
        %s224 = scalar_lea.vmem %s2, %s223
        %s225 = smul.u32 2, %s22
        %s226 = smul.u32 8, %s21
        %s227 = smul.u32 2, %s22
        %v228 = vld [vmem:[%s213] sm:$0xff]
        %v229 = vld [vmem:[%s213 + $0x8] sm:$0xff]
        %v230 = vld [vmem:[%s213 + $0x10] sm:$0xff]
        %v231 = vld [vmem:[%s213 + $0x18] sm:$0xff]
        %v232 = vld [vmem:[%s213 + $0x20] sm:$0xff]
        %v233 = vld [vmem:[%s213 + $0x28] sm:$0xff]
        %v234 = vld [vmem:[%s213 + $0x30] sm:$0xff]
        %v235 = vld [vmem:[%s213 + $0x38] sm:$0xff]
        %v236 = vld [vmem:[%s219] sm:$0xff]
        %v237 = vld [vmem:[%s219 + $0x8] sm:$0xff]
        %v238 = vld [vmem:[%s219 + $0x10] sm:$0xff]
        %v239 = vld [vmem:[%s219 + $0x18] sm:$0xff]
        %v240 = vld [vmem:[%s219 + $0x20] sm:$0xff]
        %v241 = vld [vmem:[%s219 + $0x28] sm:$0xff]
        %v242 = vld [vmem:[%s219 + $0x30] sm:$0xff]
        %v243 = vld [vmem:[%s219 + $0x38] sm:$0xff]
        %v244 = vld [vmem:[%s224] sm:$0x3]
        %v246 = vperm.slane %v244, 0
        %v247 = vperm.slane %v244, 1
        %vm250 = vcmask 261120
        %v252 = vsel %vm250, %v228, 0
        %v255 = vsel %vm250, %v229, 0
        %v258 = vsel %vm250, %v230, 0
        %v261 = vsel %vm250, %v231, 0
        %v264 = vsel %vm250, %v232, 0
        %v267 = vsel %vm250, %v233, 0
        %v270 = vsel %vm250, %v234, 0
        %v273 = vsel %vm250, %v235, 0
        %275 = vmatpush.msra.mxu0 0.0
        %276 = vmatpush.msra.mxu0 0.0
        %277 = vmatpush.msra.mxu0 0.0
        %278 = vmatpush.msra.mxu0 0.0
        %279 = vmatpush.msra.mxu0 0.0
        %280 = vmatpush.msra.mxu0 0.0
        %281 = vmatpush.msra.mxu0 0.0
        %282 = vmatpush.msra.mxu0 0.0
        %283 = vmatpush.msra.mxu0 0.0
        %284 = vmatpush.msra.mxu0 0.0
        %285 = vmatpush.msra.mxu0 0.0
        %286 = vmatpush.msra.mxu0 0.0
        %287 = vmatpush.msra.mxu0 %v242
        %288 = vmatpush.msra.mxu0 %v240
        %289 = vmatpush.msra.mxu0 %v238
        %290 = vmatpush.msra.mxu0 %v236
        %291 = vmatmul.f32.gmra.mxu0 %v252
        %v292 = vpop.f32.mrf.mxu0
        %v293 = vadd.f32 %v246, %v292
        %294 = vmatmul.f32.gmra.mxu0 %v255
        %v295 = vpop.f32.mrf.mxu0
        %v296 = vadd.f32 %v246, %v295
        %297 = vmatmul.f32.gmra.mxu0 %v258
        %v298 = vpop.f32.mrf.mxu0
        %v299 = vadd.f32 %v246, %v298
        %300 = vmatmul.f32.gmra.mxu0 %v261
        %v301 = vpop.f32.mrf.mxu0
        %v302 = vadd.f32 %v246, %v301
        %303 = vmatmul.f32.gmra.mxu0 %v264
        %v304 = vpop.f32.mrf.mxu0
        %v305 = vadd.f32 %v246, %v304
        %306 = vmatmul.f32.gmra.mxu0 %v267
        %v307 = vpop.f32.mrf.mxu0
        %v308 = vadd.f32 %v246, %v307
        %309 = vmatmul.f32.gmra.mxu0 %v270
        %v310 = vpop.f32.mrf.mxu0
        %v311 = vadd.f32 %v246, %v310
        %312 = vmatmul.f32.gmra.mxu0 %v273
        %v313 = vpop.f32.mrf.mxu0
        %v314 = vadd.f32 %v246, %v313
        %315 = vdwg.mxu0
        %316 = vmatpush.msra.mxu0 0.0
        %317 = vmatpush.msra.mxu0 0.0
        %318 = vmatpush.msra.mxu0 0.0
        %319 = vmatpush.msra.mxu0 0.0
        %320 = vmatpush.msra.mxu0 0.0
        %321 = vmatpush.msra.mxu0 0.0
        %322 = vmatpush.msra.mxu0 0.0
        %323 = vmatpush.msra.mxu0 0.0
        %324 = vmatpush.msra.mxu0 0.0
        %325 = vmatpush.msra.mxu0 0.0
        %326 = vmatpush.msra.mxu0 0.0
        %327 = vmatpush.msra.mxu0 0.0
        %328 = vmatpush.msra.mxu0 %v243
        %329 = vmatpush.msra.mxu0 %v241
        %330 = vmatpush.msra.mxu0 %v239
        %331 = vmatpush.msra.mxu0 %v237
        %332 = vmatmul.f32.gmra.mxu0 %v252
        %v333 = vpop.f32.mrf.mxu0
        %v334 = vadd.f32 %v247, %v333
        %335 = vmatmul.f32.gmra.mxu0 %v255
        %v336 = vpop.f32.mrf.mxu0
        %v337 = vadd.f32 %v247, %v336
        %338 = vmatmul.f32.gmra.mxu0 %v258
        %v339 = vpop.f32.mrf.mxu0
        %v340 = vadd.f32 %v247, %v339
        %341 = vmatmul.f32.gmra.mxu0 %v261
        %v342 = vpop.f32.mrf.mxu0
        %v343 = vadd.f32 %v247, %v342
        %344 = vmatmul.f32.gmra.mxu0 %v264
        %v345 = vpop.f32.mrf.mxu0
        %v346 = vadd.f32 %v247, %v345
        %347 = vmatmul.f32.gmra.mxu0 %v267
        %v348 = vpop.f32.mrf.mxu0
        %v349 = vadd.f32 %v247, %v348
        %350 = vmatmul.f32.gmra.mxu0 %v270
        %v351 = vpop.f32.mrf.mxu0
        %v352 = vadd.f32 %v247, %v351
        %353 = vmatmul.f32.gmra.mxu0 %v273
        %v354 = vpop.f32.mrf.mxu0
        %v355 = vadd.f32 %v247, %v354
        %356 = vdwg.mxu0
        %357 = vst [vmem:[%s208] sm:$0xff] %v293
        %358 = vst [vmem:[%s208 + $0x8] sm:$0xff] %v334
        %359 = vst [vmem:[%s208 + $0x10] sm:$0xff] %v296
        %360 = vst [vmem:[%s208 + $0x18] sm:$0xff] %v337
        %361 = vst [vmem:[%s208 + $0x20] sm:$0xff] %v299
        %362 = vst [vmem:[%s208 + $0x28] sm:$0xff] %v340
        %363 = vst [vmem:[%s208 + $0x30] sm:$0xff] %v302
        %364 = vst [vmem:[%s208 + $0x38] sm:$0xff] %v343
        %365 = vst [vmem:[%s208 + $0x40] sm:$0xff] %v305
        %366 = vst [vmem:[%s208 + $0x48] sm:$0xff] %v346
        %367 = vst [vmem:[%s208 + $0x50] sm:$0xff] %v308
        %368 = vst [vmem:[%s208 + $0x58] sm:$0xff] %v349
        %369 = vst [vmem:[%s208 + $0x60] sm:$0xff] %v311
        %370 = vst [vmem:[%s208 + $0x68] sm:$0xff] %v352
        %371 = vst [vmem:[%s208 + $0x70] sm:$0xff] %v314
        %372 = vst [vmem:[%s208 + $0x78] sm:$0xff] %v355
        %s373 = sand.u32 %s117, 1
        %s374 = scalar_lea.sflag [#allocation3], %s373
        %s375 = sand.u32 %s117, 1
        %s376 = smul.addr %s375, 128
        %s377 = scalar_lea.vmem [#allocation2], %s376
        // Predicated region
        $region33: #{tpu_custom_call.1} parent=31 // pred_check
          %p378 = pneg %p127
        $region34: #{tpu_custom_call.1} parent=31 // pred_check_branch
          %380 = sbr.rel (%p378) target = $region36
        $region35: #{tpu_custom_call.1} parent=31 // pred_region
          %s381 = smul.u32 8, %s21
          %s382 = smul.u32 2, %s22
          %384 = vsyncadd %s374, 0
          %s385 = smul.addr %s381, 2
          %s386 = sadd.s32 %s382, %s385
          %s387 = smul.addr %s386, 8
          %s388 = scalar_lea.hbm %s3, %s387
          %s389 = sshll.u32 %s377, 4
          %s390 = int_to_ptr.vmem [resolvable:$true] %s389
          %s391 = sshll.u32 %s388, 4
          %s392 = int_to_ptr.hbm [resolvable:$true] %s391
          %397 = dma.vmem_to_hbm [thread:$0]  %s390, 2048, %s392, %s374, 256, 256, 16
        $region36: #{tpu_custom_call.1} parent=31 // pred_fallthru
          _
      $region32: #{tpu_custom_call.1} parent=5 // pred_fallthru
        _
      %p398 = scmp.le.s32.totalorder 2, %s12
      // Predicated region
      $region37: #{tpu_custom_call.1} parent=5 // pred_check
        %p399 = pneg %p398
      $region38: #{tpu_custom_call.1} parent=5 // pred_check_branch
        %401 = sbr.rel (%p399) target = $region40
      $region39: #{tpu_custom_call.1} parent=5 // pred_region
        %s402 = ssub.s32 %s12, 2
        // Predicated region
        $region41: #{tpu_custom_call.1} parent=39 // pred_check
          %p403 = pneg %p133
        $region42: #{tpu_custom_call.1} parent=39 // pred_check_branch
          %405 = sbr.rel (%p403) target = $region44
        $region43: #{tpu_custom_call.1} parent=39 // pred_region
          %s406 = sand.u32 %s118, 1
          %s407 = scalar_lea.sflag [#allocation3], %s406
          %s408 = sand.u32 %s118, 1
          %s409 = smul.addr %s408, 128
          %s410 = scalar_lea.vmem [#allocation2], %s409
          %412 = dma.done %s407, 2048
        $region44: #{tpu_custom_call.1} parent=39 // pred_fallthru
          _
      $region40: #{tpu_custom_call.1} parent=5 // pred_fallthru
        _
    $region6: #{tpu_custom_call.1} parent=1 // loop_footer
      %s16 = sadd.s32 1, %s12
    $region7: #{tpu_custom_call.1} parent=1 // loop_footer_branch
      %11 = sbr.rel target = $region3
    $region8: #{tpu_custom_call.1} parent=1 // loop_exit
      _
    %413 = vsyncpa [#allocation3], 1
    %s414 = scalar_lea.sflag [#allocation3], 1
    %415 = vsyncpa %s414, 1

</llo_original>
